<compile_context>
chip_gen: v7x
topology: tpu7x:2x2x1
jax: 0.10.0
libtpu: 0.0.40
codegen_flags: <defaults>
</compile_context>

<pallas_src>
import functools

import numpy as np
import jax
import jax.numpy as jnp
from jax.experimental import pallas as pl
from jax.experimental.pallas import tpu as pltpu


def _round_up(x, m):
    return (x + m - 1) // m * m


def _freq_bias_kernel(c0c_ref, c1_ref, w_ref, o_ref, *, ti):
    # c0c_ref: (1, Btile, ti)  f32      -- chunk of obj_cands0 columns
    # c1_ref : (Btile, C_pad)  f32      -- full obj_cands1 row block
    # w_ref  : (ti, C_pad, P_pad)       -- matching weight slab (bf16 or f32)
    # o_ref  : (Btile, P_pad)  f32      -- resident accumulator across K axis
    k = pl.program_id(1)

    @pl.when(k == 0)
    def _init():
        o_ref[...] = jnp.zeros_like(o_ref)

    c0c = c0c_ref[0]          # (Btile, ti)
    c1 = c1_ref[...]          # (Btile, C_pad)
    mm_dtype = w_ref.dtype

    # Static unroll: `ti` plain 2-D MXU matmuls, f32 accumulate into o_ref.
    for t in range(ti):
        joint_row = c0c[:, t:t + 1] * c1                      # (Btile, C_pad) f32, VPU
        o_ref[...] += jnp.dot(joint_row.astype(mm_dtype), w_ref[t],
                              preferred_element_type=jnp.float32)


@functools.partial(jax.jit, static_argnames=("btile", "ti", "use_bf16"))
def frequency_bias_forward(obj_cands0, obj_cands1, weight, *,
                           btile=256, ti=8, use_bf16=True):
    """obj_cands0/1: [B, C] f32, weight: [C*C, P] f32 -> [B, P] f32."""
    B, C = obj_cands0.shape
    CC, P = weight.shape
    assert CC == C * C
    assert ti % 8 == 0

    # ---- padding / layout prep (plain XLA ops in the wrapper) ----
    C_pad = _round_up(C, ti)          # class axis: multiple of ti (sublane aligned)
    P_pad = _round_up(P, 128)         # predicate axis: lane-dense stores
    B_pad = _round_up(B, 8)
    btile = min(btile, B_pad)
    B_pad = _round_up(B_pad, btile)
    K = C_pad // ti                   # number of contraction chunks

    c0 = jnp.pad(obj_cands0.astype(jnp.float32), ((0, B_pad - B), (0, C_pad - C)))
    c1 = jnp.pad(obj_cands1.astype(jnp.float32), ((0, B_pad - B), (0, C_pad - C)))
    # chunk layout: c0_chunks[k, b, t] = c0[b, k*ti + t]
    c0_chunks = c0.reshape(B_pad, K, ti).transpose(1, 0, 2)

    w = weight.astype(jnp.float32).reshape(C, C, P)
    w = jnp.pad(w, ((0, C_pad - C), (0, C_pad - C), (0, P_pad - P)))
    if use_bf16:
        w = w.astype(jnp.bfloat16)

    flops = 2 * B * C * C * P
    bytes_accessed = 2 * B * C * 4 + CC * P * (2 if use_bf16 else 4) + B * P * 4

    out = pl.pallas_call(
        functools.partial(_freq_bias_kernel, ti=ti),
        out_shape=jax.ShapeDtypeStruct((B_pad, P_pad), jnp.float32),
        grid=(B_pad // btile, K),
        in_specs=[
            pl.BlockSpec((1, btile, ti), lambda bi, ki: (ki, bi, 0)),
            pl.BlockSpec((btile, C_pad), lambda bi, ki: (bi, 0)),
            pl.BlockSpec((ti, C_pad, P_pad), lambda bi, ki: (ki, 0, 0)),
        ],
        out_specs=pl.BlockSpec((btile, P_pad), lambda bi, ki: (bi, 0)),
        compiler_params=pltpu.CompilerParams(
            dimension_semantics=("parallel", "arbitrary")),
        cost_estimate=pl.CostEstimate(flops=flops, transcendentals=0,
                                      bytes_accessed=bytes_accessed),
    )(c0_chunks, c1, w)

    return out[:B, :P]


def make_pred_dist(num_objs, num_preds, eps=1e-3, seed=0):
    """Deterministic synthetic replacement for get_counts() + __init__ math.

    Mirrors FrequencyBias.__init__: bg += 1; fg[:, :, 0] = bg;
    pred_dist = log(fg / fg.sum(-1, keepdims=True) + eps), flattened to (C*C, P).
    """
    # TODO(synk): the real module loads Visual Genome statistics (get_counts);
    # we synthesize deterministic counts instead.
    rng = np.random.RandomState(seed)
    fg_matrix = rng.randint(0, 50, size=(num_objs, num_objs, num_preds)).astype(np.int64)
    bg_matrix = rng.randint(0, 50, size=(num_objs, num_objs)).astype(np.int64)
    bg_matrix += 1
    fg_matrix[:, :, 0] = bg_matrix
    pred_dist = np.log(fg_matrix / fg_matrix.sum(2)[:, :, None] + eps)
    pred_dist = pred_dist.reshape(-1, num_preds).astype(np.float32)   # (C*C, P)
    return jnp.asarray(pred_dist)


if __name__ == "__main__":
    # Small shapes for the correctness check (real module: C=151, P=51).
    B = 8          # batch size (object pairs)
    C = 16         # num object classes
    P = 8          # num predicates

    weight = make_pred_dist(C, P, seed=0)            # (C*C, P)

    key = jax.random.PRNGKey(0)
    k0, k1 = jax.random.split(key)
    obj_cands0 = jax.nn.softmax(jax.random.normal(k0, (B, C), dtype=jnp.float32), axis=-1)
    obj_cands1 = jax.nn.softmax(jax.random.normal(k1, (B, C), dtype=jnp.float32), axis=-1)

    # Pure-JAX reference (same math as the PyTorch forward).
    joint = obj_cands0[:, :, None] * obj_cands1[:, None, :]
    ref = joint.reshape(B, C * C) @ weight

    # bf16 matmul-operand path (default): loosened tolerance for the cast.
    out = frequency_bias_forward(obj_cands0, obj_cands1, weight)
    out = jax.block_until_ready(out)
    np.testing.assert_allclose(np.asarray(out), np.asarray(ref), rtol=2e-2, atol=2e-2)

    # full-f32 path: exact (up to accumulation order) match.
    out_f32 = frequency_bias_forward(obj_cands0, obj_cands1, weight, use_bf16=False)
    out_f32 = jax.block_until_ready(out_f32)
    np.testing.assert_allclose(np.asarray(out_f32), np.asarray(ref), rtol=1e-5, atol=1e-5)

    print("KERNEL_OK")
</pallas_src>

<mosaic_0001>
module attributes {stable_mosaic.version = 11 : i64} {
  func.func @_freq_bias_kernel(%arg0: i32, %arg1: i32, %arg2: memref<1x8x8xf32, #tpu.memory_space<vmem>>, %arg3: memref<8x16xf32, #tpu.memory_space<vmem>>, %arg4: memref<8x16x128xbf16, #tpu.memory_space<vmem>>, %arg5: memref<8x128xf32, #tpu.memory_space<vmem>>) attributes {dimension_semantics = [#tpu.dimension_semantics<parallel>, #tpu.dimension_semantics<arbitrary>], iteration_bounds = array<i64: 1, 2>, scalar_prefetch = 0 : i64, scratch_operands = 0 : i64, tpu.core_type = #tpu.core_type<tc>, window_params = [{transform_indices = @transform_0, window_bounds = array<i64: 1, 8, 8>}, {transform_indices = @transform_1, window_bounds = array<i64: 8, 16>}, {transform_indices = @transform_2, window_bounds = array<i64: 8, 16, 128>}, {transform_indices = @transform_3, window_bounds = array<i64: 8, 128>}]} {
    %c0_i32 = arith.constant 0 : i32
    %0 = arith.cmpi eq, %arg1, %c0_i32 : i32
    %1 = arith.extui %0 : i1 to i32
    %c0_i32_0 = arith.constant 0 : i32
    %2 = arith.cmpi ne, %1, %c0_i32_0 : i32
    scf.if %2 {
      %cst_61 = arith.constant 0.000000e+00 : f32
      %86 = vector.broadcast %cst_61 : f32 to vector<8x128xf32>
      %c0_62 = arith.constant 0 : index
      %c0_63 = arith.constant 0 : index
      %87 = vector.load %arg5[%c0_62, %c0_63] : memref<8x128xf32, #tpu.memory_space<vmem>>, vector<8x128xf32>
      tpu.vector_store %arg5[%c0_62, %c0_63], %86 {strides = array<i32>} : memref<8x128xf32, #tpu.memory_space<vmem>>, vector<8x128xf32>,
    } else {
    }
    %c0 = arith.constant 0 : index
    %c0_1 = arith.constant 0 : index
    %c0_2 = arith.constant 0 : index
    %3 = vector.load %arg2[%c0, %c0_1, %c0_2] : memref<1x8x8xf32, #tpu.memory_space<vmem>>, vector<1x8x8xf32>
    %4 = vector.shape_cast %3 : vector<1x8x8xf32> to vector<8x8xf32>
    %c0_3 = arith.constant 0 : index
    %c0_4 = arith.constant 0 : index
    %5 = vector.load %arg3[%c0_3, %c0_4] : memref<8x16xf32, #tpu.memory_space<vmem>>, vector<8x16xf32>
    %6 = vector.extract_strided_slice %4 {offsets = [0, 0], sizes = [8, 1], strides = [1, 1]} : vector<8x8xf32> to vector<8x1xf32>
    %7 = vector.broadcast %6 : vector<8x1xf32> to vector<8x16xf32>
    %8 = arith.mulf %7, %5 : vector<8x16xf32>
    %c0_5 = arith.constant 0 : index
    %c0_6 = arith.constant 0 : index
    %9 = vector.load %arg5[%c0_5, %c0_6] : memref<8x128xf32, #tpu.memory_space<vmem>>, vector<8x128xf32>
    %10 = arith.truncf %8 : vector<8x16xf32> to vector<8x16xbf16>
    %c0_7 = arith.constant 0 : index
    %c0_8 = arith.constant 0 : index
    %c0_9 = arith.constant 0 : index
    %11 = vector.load %arg4[%c0_7, %c0_8, %c0_9] : memref<8x16x128xbf16, #tpu.memory_space<vmem>>, vector<1x16x128xbf16>
    %12 = vector.shape_cast %11 : vector<1x16x128xbf16> to vector<16x128xbf16>
    %cst = arith.constant dense<0.000000e+00> : vector<8x128xf32>
    %13 = tpu.matmul %10, %12, %cst {dimension_numbers = #tpu.dot_dimension_numbers<[1], [0], [0], [1], [0, 0, 1, 1], [], []>} : vector<8x16xbf16>, vector<16x128xbf16>, vector<8x128xf32> -> vector<8x128xf32>
    %14 = arith.addf %9, %13 : vector<8x128xf32>
    %c0_10 = arith.constant 0 : index
    %c0_11 = arith.constant 0 : index
    %15 = vector.load %arg5[%c0_10, %c0_11] : memref<8x128xf32, #tpu.memory_space<vmem>>, vector<8x128xf32>
    tpu.vector_store %arg5[%c0_10, %c0_11], %14 {strides = array<i32>} : memref<8x128xf32, #tpu.memory_space<vmem>>, vector<8x128xf32>,
    %16 = vector.extract_strided_slice %4 {offsets = [0, 1], sizes = [8, 1], strides = [1, 1]} : vector<8x8xf32> to vector<8x1xf32>
    %17 = vector.broadcast %16 : vector<8x1xf32> to vector<8x16xf32>
    %18 = arith.mulf %17, %5 : vector<8x16xf32>
    %c0_12 = arith.constant 0 : index
    %c0_13 = arith.constant 0 : index
    %19 = vector.load %arg5[%c0_12, %c0_13] : memref<8x128xf32, #tpu.memory_space<vmem>>, vector<8x128xf32>
    %20 = arith.truncf %18 : vector<8x16xf32> to vector<8x16xbf16>
    %c1 = arith.constant 1 : index
    %c0_14 = arith.constant 0 : index
    %c0_15 = arith.constant 0 : index
    %21 = vector.load %arg4[%c1, %c0_14, %c0_15] : memref<8x16x128xbf16, #tpu.memory_space<vmem>>, vector<1x16x128xbf16>
    %22 = vector.shape_cast %21 : vector<1x16x128xbf16> to vector<16x128xbf16>
    %cst_16 = arith.constant dense<0.000000e+00> : vector<8x128xf32>
    %23 = tpu.matmul %20, %22, %cst_16 {dimension_numbers = #tpu.dot_dimension_numbers<[1], [0], [0], [1], [0, 0, 1, 1], [], []>} : vector<8x16xbf16>, vector<16x128xbf16>, vector<8x128xf32> -> vector<8x128xf32>
    %24 = arith.addf %19, %23 : vector<8x128xf32>
    %c0_17 = arith.constant 0 : index
    %c0_18 = arith.constant 0 : index
    %25 = vector.load %arg5[%c0_17, %c0_18] : memref<8x128xf32, #tpu.memory_space<vmem>>, vector<8x128xf32>
    tpu.vector_store %arg5[%c0_17, %c0_18], %24 {strides = array<i32>} : memref<8x128xf32, #tpu.memory_space<vmem>>, vector<8x128xf32>,
    %26 = vector.extract_strided_slice %4 {offsets = [0, 2], sizes = [8, 1], strides = [1, 1]} : vector<8x8xf32> to vector<8x1xf32>
    %27 = vector.broadcast %26 : vector<8x1xf32> to vector<8x16xf32>
    %28 = arith.mulf %27, %5 : vector<8x16xf32>
    %c0_19 = arith.constant 0 : index
    %c0_20 = arith.constant 0 : index
    %29 = vector.load %arg5[%c0_19, %c0_20] : memref<8x128xf32, #tpu.memory_space<vmem>>, vector<8x128xf32>
    %30 = arith.truncf %28 : vector<8x16xf32> to vector<8x16xbf16>
    %c2 = arith.constant 2 : index
    %c0_21 = arith.constant 0 : index
    %c0_22 = arith.constant 0 : index
    %31 = vector.load %arg4[%c2, %c0_21, %c0_22] : memref<8x16x128xbf16, #tpu.memory_space<vmem>>, vector<1x16x128xbf16>
    %32 = vector.shape_cast %31 : vector<1x16x128xbf16> to vector<16x128xbf16>
    %cst_23 = arith.constant dense<0.000000e+00> : vector<8x128xf32>
    %33 = tpu.matmul %30, %32, %cst_23 {dimension_numbers = #tpu.dot_dimension_numbers<[1], [0], [0], [1], [0, 0, 1, 1], [], []>} : vector<8x16xbf16>, vector<16x128xbf16>, vector<8x128xf32> -> vector<8x128xf32>
    %34 = arith.addf %29, %33 : vector<8x128xf32>
    %c0_24 = arith.constant 0 : index
    %c0_25 = arith.constant 0 : index
    %35 = vector.load %arg5[%c0_24, %c0_25] : memref<8x128xf32, #tpu.memory_space<vmem>>, vector<8x128xf32>
    tpu.vector_store %arg5[%c0_24, %c0_25], %34 {strides = array<i32>} : memref<8x128xf32, #tpu.memory_space<vmem>>, vector<8x128xf32>,
    %36 = vector.extract_strided_slice %4 {offsets = [0, 3], sizes = [8, 1], strides = [1, 1]} : vector<8x8xf32> to vector<8x1xf32>
    %37 = vector.broadcast %36 : vector<8x1xf32> to vector<8x16xf32>
    %38 = arith.mulf %37, %5 : vector<8x16xf32>
    %c0_26 = arith.constant 0 : index
    %c0_27 = arith.constant 0 : index
    %39 = vector.load %arg5[%c0_26, %c0_27] : memref<8x128xf32, #tpu.memory_space<vmem>>, vector<8x128xf32>
    %40 = arith.truncf %38 : vector<8x16xf32> to vector<8x16xbf16>
    %c3 = arith.constant 3 : index
    %c0_28 = arith.constant 0 : index
    %c0_29 = arith.constant 0 : index
    %41 = vector.load %arg4[%c3, %c0_28, %c0_29] : memref<8x16x128xbf16, #tpu.memory_space<vmem>>, vector<1x16x128xbf16>
    %42 = vector.shape_cast %41 : vector<1x16x128xbf16> to vector<16x128xbf16>
    %cst_30 = arith.constant dense<0.000000e+00> : vector<8x128xf32>
    %43 = tpu.matmul %40, %42, %cst_30 {dimension_numbers = #tpu.dot_dimension_numbers<[1], [0], [0], [1], [0, 0, 1, 1], [], []>} : vector<8x16xbf16>, vector<16x128xbf16>, vector<8x128xf32> -> vector<8x128xf32>
    %44 = arith.addf %39, %43 : vector<8x128xf32>
    %c0_31 = arith.constant 0 : index
    %c0_32 = arith.constant 0 : index
    %45 = vector.load %arg5[%c0_31, %c0_32] : memref<8x128xf32, #tpu.memory_space<vmem>>, vector<8x128xf32>
    tpu.vector_store %arg5[%c0_31, %c0_32], %44 {strides = array<i32>} : memref<8x128xf32, #tpu.memory_space<vmem>>, vector<8x128xf32>,
    %46 = vector.extract_strided_slice %4 {offsets = [0, 4], sizes = [8, 1], strides = [1, 1]} : vector<8x8xf32> to vector<8x1xf32>
    %47 = vector.broadcast %46 : vector<8x1xf32> to vector<8x16xf32>
    %48 = arith.mulf %47, %5 : vector<8x16xf32>
    %c0_33 = arith.constant 0 : index
    %c0_34 = arith.constant 0 : index
    %49 = vector.load %arg5[%c0_33, %c0_34] : memref<8x128xf32, #tpu.memory_space<vmem>>, vector<8x128xf32>
    %50 = arith.truncf %48 : vector<8x16xf32> to vector<8x16xbf16>
    %c4 = arith.constant 4 : index
    %c0_35 = arith.constant 0 : index
    %c0_36 = arith.constant 0 : index
    %51 = vector.load %arg4[%c4, %c0_35, %c0_36] : memref<8x16x128xbf16, #tpu.memory_space<vmem>>, vector<1x16x128xbf16>
    %52 = vector.shape_cast %51 : vector<1x16x128xbf16> to vector<16x128xbf16>
    %cst_37 = arith.constant dense<0.000000e+00> : vector<8x128xf32>
    %53 = tpu.matmul %50, %52, %cst_37 {dimension_numbers = #tpu.dot_dimension_numbers<[1], [0], [0], [1], [0, 0, 1, 1], [], []>} : vector<8x16xbf16>, vector<16x128xbf16>, vector<8x128xf32> -> vector<8x128xf32>
    %54 = arith.addf %49, %53 : vector<8x128xf32>
    %c0_38 = arith.constant 0 : index
    %c0_39 = arith.constant 0 : index
    %55 = vector.load %arg5[%c0_38, %c0_39] : memref<8x128xf32, #tpu.memory_space<vmem>>, vector<8x128xf32>
    tpu.vector_store %arg5[%c0_38, %c0_39], %54 {strides = array<i32>} : memref<8x128xf32, #tpu.memory_space<vmem>>, vector<8x128xf32>,
    %56 = vector.extract_strided_slice %4 {offsets = [0, 5], sizes = [8, 1], strides = [1, 1]} : vector<8x8xf32> to vector<8x1xf32>
    %57 = vector.broadcast %56 : vector<8x1xf32> to vector<8x16xf32>
    %58 = arith.mulf %57, %5 : vector<8x16xf32>
    %c0_40 = arith.constant 0 : index
    %c0_41 = arith.constant 0 : index
    %59 = vector.load %arg5[%c0_40, %c0_41] : memref<8x128xf32, #tpu.memory_space<vmem>>, vector<8x128xf32>
    %60 = arith.truncf %58 : vector<8x16xf32> to vector<8x16xbf16>
    %c5 = arith.constant 5 : index
    %c0_42 = arith.constant 0 : index
    %c0_43 = arith.constant 0 : index
    %61 = vector.load %arg4[%c5, %c0_42, %c0_43] : memref<8x16x128xbf16, #tpu.memory_space<vmem>>, vector<1x16x128xbf16>
    %62 = vector.shape_cast %61 : vector<1x16x128xbf16> to vector<16x128xbf16>
    %cst_44 = arith.constant dense<0.000000e+00> : vector<8x128xf32>
    %63 = tpu.matmul %60, %62, %cst_44 {dimension_numbers = #tpu.dot_dimension_numbers<[1], [0], [0], [1], [0, 0, 1, 1], [], []>} : vector<8x16xbf16>, vector<16x128xbf16>, vector<8x128xf32> -> vector<8x128xf32>
    %64 = arith.addf %59, %63 : vector<8x128xf32>
    %c0_45 = arith.constant 0 : index
    %c0_46 = arith.constant 0 : index
    %65 = vector.load %arg5[%c0_45, %c0_46] : memref<8x128xf32, #tpu.memory_space<vmem>>, vector<8x128xf32>
    tpu.vector_store %arg5[%c0_45, %c0_46], %64 {strides = array<i32>} : memref<8x128xf32, #tpu.memory_space<vmem>>, vector<8x128xf32>,
    %66 = vector.extract_strided_slice %4 {offsets = [0, 6], sizes = [8, 1], strides = [1, 1]} : vector<8x8xf32> to vector<8x1xf32>
    %67 = vector.broadcast %66 : vector<8x1xf32> to vector<8x16xf32>
    %68 = arith.mulf %67, %5 : vector<8x16xf32>
    %c0_47 = arith.constant 0 : index
    %c0_48 = arith.constant 0 : index
    %69 = vector.load %arg5[%c0_47, %c0_48] : memref<8x128xf32, #tpu.memory_space<vmem>>, vector<8x128xf32>
    %70 = arith.truncf %68 : vector<8x16xf32> to vector<8x16xbf16>
    %c6 = arith.constant 6 : index
    %c0_49 = arith.constant 0 : index
    %c0_50 = arith.constant 0 : index
    %71 = vector.load %arg4[%c6, %c0_49, %c0_50] : memref<8x16x128xbf16, #tpu.memory_space<vmem>>, vector<1x16x128xbf16>
    %72 = vector.shape_cast %71 : vector<1x16x128xbf16> to vector<16x128xbf16>
    %cst_51 = arith.constant dense<0.000000e+00> : vector<8x128xf32>
    %73 = tpu.matmul %70, %72, %cst_51 {dimension_numbers = #tpu.dot_dimension_numbers<[1], [0], [0], [1], [0, 0, 1, 1], [], []>} : vector<8x16xbf16>, vector<16x128xbf16>, vector<8x128xf32> -> vector<8x128xf32>
    %74 = arith.addf %69, %73 : vector<8x128xf32>
    %c0_52 = arith.constant 0 : index
    %c0_53 = arith.constant 0 : index
    %75 = vector.load %arg5[%c0_52, %c0_53] : memref<8x128xf32, #tpu.memory_space<vmem>>, vector<8x128xf32>
    tpu.vector_store %arg5[%c0_52, %c0_53], %74 {strides = array<i32>} : memref<8x128xf32, #tpu.memory_space<vmem>>, vector<8x128xf32>,
    %76 = vector.extract_strided_slice %4 {offsets = [0, 7], sizes = [8, 1], strides = [1, 1]} : vector<8x8xf32> to vector<8x1xf32>
    %77 = vector.broadcast %76 : vector<8x1xf32> to vector<8x16xf32>
    %78 = arith.mulf %77, %5 : vector<8x16xf32>
    %c0_54 = arith.constant 0 : index
    %c0_55 = arith.constant 0 : index
    %79 = vector.load %arg5[%c0_54, %c0_55] : memref<8x128xf32, #tpu.memory_space<vmem>>, vector<8x128xf32>
    %80 = arith.truncf %78 : vector<8x16xf32> to vector<8x16xbf16>
    %c7 = arith.constant 7 : index
    %c0_56 = arith.constant 0 : index
    %c0_57 = arith.constant 0 : index
    %81 = vector.load %arg4[%c7, %c0_56, %c0_57] : memref<8x16x128xbf16, #tpu.memory_space<vmem>>, vector<1x16x128xbf16>
    %82 = vector.shape_cast %81 : vector<1x16x128xbf16> to vector<16x128xbf16>
    %cst_58 = arith.constant dense<0.000000e+00> : vector<8x128xf32>
    %83 = tpu.matmul %80, %82, %cst_58 {dimension_numbers = #tpu.dot_dimension_numbers<[1], [0], [0], [1], [0, 0, 1, 1], [], []>} : vector<8x16xbf16>, vector<16x128xbf16>, vector<8x128xf32> -> vector<8x128xf32>
    %84 = arith.addf %79, %83 : vector<8x128xf32>
    %c0_59 = arith.constant 0 : index
    %c0_60 = arith.constant 0 : index
    %85 = vector.load %arg5[%c0_59, %c0_60] : memref<8x128xf32, #tpu.memory_space<vmem>>, vector<8x128xf32>
    tpu.vector_store %arg5[%c0_59, %c0_60], %84 {strides = array<i32>} : memref<8x128xf32, #tpu.memory_space<vmem>>, vector<8x128xf32>,
    return
  }
  func.func @transform_0(%arg0: i32, %arg1: i32) -> (i32, i32, i32) {
    %c0_i32 = arith.constant 0 : i32
    %c0_i32_0 = arith.constant 0 : i32
    return %arg1, %arg0, %c0_i32 : i32, i32, i32
  }
  func.func @transform_1(%arg0: i32, %arg1: i32) -> (i32, i32) {
    %c0_i32 = arith.constant 0 : i32
    %c0_i32_0 = arith.constant 0 : i32
    return %arg0, %c0_i32 : i32, i32
  }
  func.func @transform_2(%arg0: i32, %arg1: i32) -> (i32, i32, i32) {
    %c0_i32 = arith.constant 0 : i32
    %c0_i32_0 = arith.constant 0 : i32
    %c0_i32_1 = arith.constant 0 : i32
    return %arg1, %c0_i32, %c0_i32_0 : i32, i32, i32
  }
  func.func @transform_3(%arg0: i32, %arg1: i32) -> (i32, i32) {
    %c0_i32 = arith.constant 0 : i32
    %c0_i32_0 = arith.constant 0 : i32
    return %arg0, %c0_i32 : i32, i32
  }
}

</mosaic_0001>

<llo_original>
// kernel: frequency_bias_forward.1
$region0: #{frequency_bias_forward.1}
  #allocation0 [shape = 'u32[]', space=smem, size = 0x4, offset = 0x4, fixed_abs, tag = 'smem constant byte address 0x4 - core index']
  #allocation1 [shape = 'u32[144,128]{1,0:T(1,128)}', space=vmem, size = 0x12000, scoped, tag = 'internal scratch']
  %s0 = inlined_call_operand.vmem [shape: f32[2,8,8], index: 0, kind: input, shape index: {}]
  %s1 = inlined_call_operand.vmem [shape: f32[8,16], index: 1, kind: input, shape index: {}]
  %s2 = inlined_call_operand.vmem [shape: bf16[16,16,128], index: 2, kind: input, shape index: {}]
  %s3 = inlined_call_operand.hbm [shape: f32[8,128], index: 3, kind: output, shape index: {}]
  %s4 = sld [smem:[#allocation0]]
  $region49: #{frequency_bias_forward.1} parent=0
    _
  %s6 = ssub.s32 1, %s4
  %s7 = scalar_select 0, %s6, %s4
  $region1: #{frequency_bias_forward.1} parent=0
    #allocation2 [shape = 'u8[4096]{0}', space=vmem, size = 0x1000, scoped, tag = 'output window, operand 0, single buffered']
    #allocation3 [shape = 's32[2]{0}', space=sflag, size = 0x8, scoped, tag = 'scoped memory for frequency_bias_forward.1']
    %8 = vsyncpa [#allocation3], 0
    loop: start=0, step=1, limit=4
    $region2: #{frequency_bias_forward.1} parent=1 // loop_pre_header
      _
    $region3: #{frequency_bias_forward.1} parent=1 // loop_header
      %s10 = sphi 0, %s14
      %p11 = scmp.ge.s32.totalorder %s10, 4
      %s17 = sphi 0, %s29
      %s18 = sphi 0, %s25
      %s19 = sphi 0, %s17
      %s20 = sphi 0, %s18
      %s21 = sphi 0, %s19
      %s22 = sphi 0, %s20
      %s34 = sphi 0, %s36
      %s37 = sphi 0, %s34
      %s38 = sphi 0, %s37
      %s54 = sphi 0, %s38
      %s60 = sphi 0, %s62
      %s63 = sphi 0, %s60
      %s64 = sphi 0, %s63
      %s80 = sphi 0, %s64
      %s86 = sphi 0, %s88
      %s89 = sphi 0, %s86
      %s90 = sphi 0, %s89
      %s106 = sphi 0, %s90
      %s112 = sphi 0, %s114
      %s115 = sphi 0, %s112
      %s116 = sphi 0, %s115
      %s132 = sphi 0, %s116
    $region4: #{frequency_bias_forward.1} parent=1 // loop_header_branch
      %13 = sbr.rel (%p11) target = $region8
    $region5: #{frequency_bias_forward.1} parent=1 // loop_body
      %s15 = ssub.s32 %s10, 1
      %s16 = ssub.s32 %s10, 2
      %s23 = sadd.s32 1, %s18
      %p24 = scmp.ge.s32.totalorder %s23, 2
      %s25 = scalar_select %p24, 0, %s23
      %s26 = sadd.s32 1, %s17
      %s27 = scalar_select %p24, %s26, %s17
      %p28 = scmp.ge.s32.totalorder %s27, 1
      %s29 = scalar_select %p28, 0, %s27
      %s30 = ssub.s32 %s18, %s25
      %s31 = ssub.s32 %s17, %s29
      %s32 = sor.u32 %s30, %s31
      %p33 = scmp.eq.s32.totalorder %s32, 0
      %s35 = sadd.s32 %s34, 1
      %s36 = scalar_select %p33, %s34, %s35
      %p39 = pneg %p33
      %p40 = scmp.eq.s32.totalorder %s10, 1
      %p41 = por %p39, %p40
      %p42 = scmp.ne.s32.totalorder %s34, %s37
      %p43 = scmp.eq.s32.totalorder %s10, 0
      %p44 = por %p42, %p43
      %p45 = scmp.ne.s32.totalorder %s34, %s37
      %p46 = scmp.eq.s32.totalorder %s15, 1
      %p47 = por %p45, %p46
      %p48 = scmp.ne.s32.totalorder %s37, %s38
      %p49 = scmp.eq.s32.totalorder %s15, 0
      %p50 = por %p48, %p49
      %p51 = scmp.ne.s32.totalorder %s37, %s38
      %p52 = scmp.eq.s32.totalorder %s16, 1
      %p53 = por %p51, %p52
      %p55 = scmp.ne.s32.totalorder %s38, %s54
      %p56 = scmp.eq.s32.totalorder %s16, 0
      %p57 = por %p55, %p56
      %s58 = ssub.s32 %s17, %s29
      %p59 = scmp.eq.s32.totalorder %s58, 0
      %s61 = sadd.s32 %s60, 1
      %s62 = scalar_select %p59, %s60, %s61
      %p65 = pneg %p59
      %p66 = scmp.eq.s32.totalorder %s10, 1
      %p67 = por %p65, %p66
      %p68 = scmp.ne.s32.totalorder %s60, %s63
      %p69 = scmp.eq.s32.totalorder %s10, 0
      %p70 = por %p68, %p69
      %p71 = scmp.ne.s32.totalorder %s60, %s63
      %p72 = scmp.eq.s32.totalorder %s15, 1
      %p73 = por %p71, %p72
      %p74 = scmp.ne.s32.totalorder %s63, %s64
      %p75 = scmp.eq.s32.totalorder %s15, 0
      %p76 = por %p74, %p75
      %p77 = scmp.ne.s32.totalorder %s63, %s64
      %p78 = scmp.eq.s32.totalorder %s16, 1
      %p79 = por %p77, %p78
      %p81 = scmp.ne.s32.totalorder %s64, %s80
      %p82 = scmp.eq.s32.totalorder %s16, 0
      %p83 = por %p81, %p82
      %s84 = ssub.s32 %s18, %s25
      %p85 = scmp.eq.s32.totalorder %s84, 0
      %s87 = sadd.s32 %s86, 1
      %s88 = scalar_select %p85, %s86, %s87
      %p91 = pneg %p85
      %p92 = scmp.eq.s32.totalorder %s10, 1
      %p93 = por %p91, %p92
      %p94 = scmp.ne.s32.totalorder %s86, %s89
      %p95 = scmp.eq.s32.totalorder %s10, 0
      %p96 = por %p94, %p95
      %p97 = scmp.ne.s32.totalorder %s86, %s89
      %p98 = scmp.eq.s32.totalorder %s15, 1
      %p99 = por %p97, %p98
      %p100 = scmp.ne.s32.totalorder %s89, %s90
      %p101 = scmp.eq.s32.totalorder %s15, 0
      %p102 = por %p100, %p101
      %p103 = scmp.ne.s32.totalorder %s89, %s90
      %p104 = scmp.eq.s32.totalorder %s16, 1
      %p105 = por %p103, %p104
      %p107 = scmp.ne.s32.totalorder %s90, %s106
      %p108 = scmp.eq.s32.totalorder %s16, 0
      %p109 = por %p107, %p108
      %s110 = ssub.s32 %s17, %s29
      %p111 = scmp.eq.s32.totalorder %s110, 0
      %s113 = sadd.s32 %s112, 1
      %s114 = scalar_select %p111, %s112, %s113
      %p117 = pneg %p111
      %p118 = scmp.eq.s32.totalorder %s10, 1
      %p119 = por %p117, %p118
      %p120 = scmp.ne.s32.totalorder %s112, %s115
      %p121 = scmp.eq.s32.totalorder %s10, 0
      %p122 = por %p120, %p121
      %p123 = scmp.ne.s32.totalorder %s112, %s115
      %p124 = scmp.eq.s32.totalorder %s15, 1
      %p125 = por %p123, %p124
      %p126 = scmp.ne.s32.totalorder %s115, %s116
      %p127 = scmp.eq.s32.totalorder %s15, 0
      %p128 = por %p126, %p127
      %p129 = scmp.ne.s32.totalorder %s115, %s116
      %p130 = scmp.eq.s32.totalorder %s16, 1
      %p131 = por %p129, %p130
      %p133 = scmp.ne.s32.totalorder %s116, %s132
      %p134 = scmp.eq.s32.totalorder %s16, 0
      %p135 = por %p133, %p134
      %p136 = scmp.le.s32.totalorder 1, %s10
      %p137 = scmp.lt.s32.totalorder %s10, 3
      %p138 = pnand %p136, %p137
      %p139 = pneg %p138
      // Predicated region
      $region9: #{frequency_bias_forward.1} parent=5 // pred_check
        _
      $region10: #{frequency_bias_forward.1} parent=5 // pred_check_branch
        %141 = sbr.rel (%p138) target = $region12
      $region11: #{frequency_bias_forward.1} parent=5 // pred_region
        %s142 = ssub.s32 %s10, 1
        // Predicated region
        $region13: #{frequency_bias_forward.1} parent=11 // pred_check
          %p143 = pneg %p76
        $region14: #{frequency_bias_forward.1} parent=11 // pred_check_branch
          %145 = sbr.rel (%p143) target = $region16
        $region15: #{frequency_bias_forward.1} parent=11 // pred_region
          %p146 = scmp.lt.s32.totalorder %s19, 0
          %s147 = scalar_select %p146, %s19, 0
          %s148 = smul.addr %s147, 8
          %s149 = scalar_lea.vmem %s1, %s148
        $region16: #{frequency_bias_forward.1} parent=11 // pred_fallthru
          _
      $region12: #{frequency_bias_forward.1} parent=5 // pred_fallthru
        _
      %p150 = scmp.lt.s32.totalorder %s10, 2
      // Predicated region
      $region17: #{frequency_bias_forward.1} parent=5 // pred_check
        %p151 = pneg %p150
      $region18: #{frequency_bias_forward.1} parent=5 // pred_check_branch
        %153 = sbr.rel (%p151) target = $region20
      $region19: #{frequency_bias_forward.1} parent=5 // pred_region
        // Predicated region
        $region21: #{frequency_bias_forward.1} parent=19 // pred_check
          %p154 = pneg %p44
        $region22: #{frequency_bias_forward.1} parent=19 // pred_check_branch
          %156 = sbr.rel (%p154) target = $region24
        $region23: #{frequency_bias_forward.1} parent=19 // pred_region
          %p157 = scmp.lt.s32.totalorder %s18, 1
          %s158 = scalar_select %p157, %s18, 1
          %p159 = scmp.lt.s32.totalorder %s17, 0
          %s160 = scalar_select %p159, %s17, 0
          %s161 = sadd.s32 %s160, %s158
          %s162 = smul.addr %s161, 8
          %s163 = scalar_lea.vmem %s0, %s162
        $region24: #{frequency_bias_forward.1} parent=19 // pred_fallthru
          _
        // Predicated region
        $region25: #{frequency_bias_forward.1} parent=19 // pred_check
          %p164 = pneg %p96
        $region26: #{frequency_bias_forward.1} parent=19 // pred_check_branch
          %166 = sbr.rel (%p164) target = $region28
        $region27: #{frequency_bias_forward.1} parent=19 // pred_region
          %s167 = smul.u32 8, %s18
          %p168 = scmp.lt.s32.totalorder %s167, 15
          %s169 = scalar_select %p168, %s167, 15
          %s170 = smul.addr %s169, 2
          %s171 = smul.addr %s170, 4
          %s172 = scalar_lea.vmem %s2, %s171
          %s173 = smul.u32 8, %s18
        $region28: #{frequency_bias_forward.1} parent=19 // pred_fallthru
          _
      $region20: #{frequency_bias_forward.1} parent=5 // pred_fallthru
        _
      %p174 = scmp.le.s32.totalorder 1, %s10
      %p175 = scmp.lt.s32.totalorder %s10, 3
      %p176 = pnand %p174, %p175
      %p177 = pneg %p176
      // Predicated region
      $region29: #{frequency_bias_forward.1} parent=5 // pred_check
        _
      $region30: #{frequency_bias_forward.1} parent=5 // pred_check_branch
        %179 = sbr.rel (%p176) target = $region32
      $region31: #{frequency_bias_forward.1} parent=5 // pred_region
        %s180 = ssub.s32 %s10, 1
        %p181 = scmp.lt.s32.totalorder %s20, 1
        %s182 = scalar_select %p181, %s20, 1
        %p183 = scmp.lt.s32.totalorder %s19, 0
        %s184 = scalar_select %p183, %s19, 0
        %s185 = sadd.s32 %s184, %s182
        %s186 = smul.addr %s185, 8
        %s187 = scalar_lea.vmem %s0, %s186
        %p188 = pneg %p50
        %p189 = pneg %p47
        %p190 = scmp.lt.s32.totalorder %s19, 0
        %s191 = scalar_select %p190, %s19, 0
        %s192 = smul.addr %s191, 8
        %s193 = scalar_lea.vmem %s1, %s192
        %p194 = pneg %p76
        %p195 = pneg %p73
        %s196 = smul.u32 8, %s20
        %p197 = scmp.lt.s32.totalorder %s196, 15
        %s198 = scalar_select %p197, %s196, 15
        %s199 = smul.addr %s198, 2
        %s200 = smul.addr %s199, 4
        %s201 = scalar_lea.vmem %s2, %s200
        %p202 = pneg %p102
        %p203 = pneg %p99
        %p204 = pneg %p128
        %p205 = pneg %p125
        %p206 = scmp.lt.s32.totalorder %s20, 1
        %s207 = scalar_select %p206, %s20, 1
        %p208 = scmp.lt.s32.totalorder %s19, 0
        %s209 = scalar_select %p208, %s19, 0
        %s210 = sadd.s32 %s209, %s207
        %s211 = smul.addr %s210, 8
        %s212 = scalar_lea.vmem %s0, %s211
        %p213 = scmp.lt.s32.totalorder %s19, 0
        %s214 = scalar_select %p213, %s19, 0
        %s215 = smul.addr %s214, 8
        %s216 = scalar_lea.vmem %s1, %s215
        %s217 = smul.u32 8, %s20
        %p218 = scmp.lt.s32.totalorder %s217, 15
        %s219 = scalar_select %p218, %s217, 15
        %s220 = smul.addr %s219, 2
        %s221 = smul.addr %s220, 4
        %s222 = scalar_lea.vmem %s2, %s221
        %s223 = smul.u32 8, %s20
        %p225 = scmp.eq.s32.totalorder %s20, 0
        // Predicated region
        $region33: #{frequency_bias_forward.1} parent=31 // pred_check
          %p226 = pneg %p225
        $region34: #{frequency_bias_forward.1} parent=31 // pred_check_branch
          %228 = sbr.rel (%p226) target = $region36
        $region35: #{frequency_bias_forward.1} parent=31 // pred_region
          %229 = vst [vmem:[#allocation2] sm:$0xff] 0.0
        $region36: #{frequency_bias_forward.1} parent=31 // pred_fallthru
          _
        %v230 = vld [vmem:[%s212] sm:$0xff]
        %v231 = vld [vmem:[%s216] sm:$0xff]
        %233 = vset.pattern.permute.xlu0 0
        %234 = vperm.xlu0 %233, %v230
        %v235 = vpop.permute.xlu0 %234
        %v237 = vmul.f32 %v235, %v231
        %v238 = vld [vmem:[#allocation2] sm:$0xff]
        %v239 = vpack.c.bf16 %v237, %v237
        %v240 = vld [vmem:[%s222] sm:$0xf]
        %v241 = vld [vmem:[%s222 + $0x4] sm:$0xf]
        %v244 = vunpack.c.l.b16 %v240
        %v245 = vunpack.c.l.b16 %v241
        %v246 = vpack.c.b16 %v245, %v244
        %vm248 = vcmask 130048
        %v250 = vsel %vm248, %v239, 0
        %252 = vmatprep.subr.bf16.mxu0 0
        %253 = vmatpush1.bf16.msra.mxu0 %v246
        %254 = vmatprep.subr.bf16.mxu0 0
        %255 = vmatpush1.bf16.msra.mxu0 0
        %256 = vmatprep.subr.bf16.mxu0 0
        %257 = vmatpush1.bf16.msra.mxu0 0
        %258 = vmatprep.subr.bf16.mxu0 0
        %259 = vmatpush1.bf16.msra.mxu0 0
        %260 = vmatprep.subr.bf16.mxu0 0
        %261 = vmatpush1.bf16.msra.mxu0 0
        %262 = vmatprep.subr.bf16.mxu0 0
        %263 = vmatpush1.bf16.msra.mxu0 0
        %264 = vmatprep.subr.bf16.mxu0 0
        %265 = vmatpush1.bf16.msra.mxu0 0
        %266 = vmatprep.subr.bf16.mxu0 0
        %267 = vmatpush1.bf16.msra.mxu0 0
        %268 = vmatprep.subr.bf16.mxu0 0
        %269 = vmatpush1.bf16.msra.mxu0 0
        %270 = vmatprep.subr.bf16.mxu0 0
        %271 = vmatpush1.bf16.msra.mxu0 0
        %272 = vmatprep.subr.bf16.mxu0 0
        %273 = vmatpush1.bf16.msra.mxu0 0
        %274 = vmatprep.subr.bf16.mxu0 0
        %275 = vmatpush1.bf16.msra.mxu0 0
        %276 = vmatprep.subr.bf16.mxu0 0
        %277 = vmatpush1.bf16.msra.mxu0 0
        %278 = vmatprep.subr.bf16.mxu0 0
        %279 = vmatpush1.bf16.msra.mxu0 0
        %280 = vmatprep.subr.bf16.mxu0 0
        %281 = vmatpush1.bf16.msra.mxu0 0
        %282 = vmatprep.subr.bf16.mxu0 0
        %283 = vmatpush1.bf16.msra.mxu0 0
        %284 = vmatprep.mubr.bf16.mxu0 0
        %285 = vmatmul.mubr.bf16.gmra.mrb[0].mxu0 %v250
        %v286 = vpop.f32.mrb[0].mxu0
        %v287 = vadd.f32 0.0, %v286
        %v288 = vpop.f32.mrb[0].mxu0
        %v289 = vpop.f32.mrb[0].mxu0
        %v290 = vpop.f32.mrb[0].mxu0
        %291 = vdwg.mxu0
        %v292 = vadd.f32 %v238, %v287
        %293 = vst [vmem:[#allocation2] sm:$0xff] %v292
        %294 = vset.pattern.permute.xlu0 1
        %295 = vperm.xlu0 %294, %v230
        %v296 = vpop.permute.xlu0 %295
        %v298 = vmul.f32 %v296, %v231
        %v299 = vld [vmem:[#allocation2] sm:$0xff]
        %v300 = vpack.c.bf16 %v298, %v298
        %s301 = scalar_lea.vmem %s222, 8
        %v302 = vld [vmem:[%s301] sm:$0xf]
        %v303 = vld [vmem:[%s301 + $0x4] sm:$0xf]
        %v306 = vunpack.c.l.b16 %v302
        %v307 = vunpack.c.l.b16 %v303
        %v308 = vpack.c.b16 %v307, %v306
        %v311 = vsel %vm248, %v300, 0
        %313 = vmatprep.subr.bf16.mxu0 0
        %314 = vmatpush1.bf16.msra.mxu0 %v308
        %315 = vmatprep.subr.bf16.mxu0 0
        %316 = vmatpush1.bf16.msra.mxu0 0
        %317 = vmatprep.subr.bf16.mxu0 0
        %318 = vmatpush1.bf16.msra.mxu0 0
        %319 = vmatprep.subr.bf16.mxu0 0
        %320 = vmatpush1.bf16.msra.mxu0 0
        %321 = vmatprep.subr.bf16.mxu0 0
        %322 = vmatpush1.bf16.msra.mxu0 0
        %323 = vmatprep.subr.bf16.mxu0 0
        %324 = vmatpush1.bf16.msra.mxu0 0
        %325 = vmatprep.subr.bf16.mxu0 0
        %326 = vmatpush1.bf16.msra.mxu0 0
        %327 = vmatprep.subr.bf16.mxu0 0
        %328 = vmatpush1.bf16.msra.mxu0 0
        %329 = vmatprep.subr.bf16.mxu0 0
        %330 = vmatpush1.bf16.msra.mxu0 0
        %331 = vmatprep.subr.bf16.mxu0 0
        %332 = vmatpush1.bf16.msra.mxu0 0
        %333 = vmatprep.subr.bf16.mxu0 0
        %334 = vmatpush1.bf16.msra.mxu0 0
        %335 = vmatprep.subr.bf16.mxu0 0
        %336 = vmatpush1.bf16.msra.mxu0 0
        %337 = vmatprep.subr.bf16.mxu0 0
        %338 = vmatpush1.bf16.msra.mxu0 0
        %339 = vmatprep.subr.bf16.mxu0 0
        %340 = vmatpush1.bf16.msra.mxu0 0
        %341 = vmatprep.subr.bf16.mxu0 0
        %342 = vmatpush1.bf16.msra.mxu0 0
        %343 = vmatprep.subr.bf16.mxu0 0
        %344 = vmatpush1.bf16.msra.mxu0 0
        %345 = vmatprep.mubr.bf16.mxu0 0
        %346 = vmatmul.mubr.bf16.gmra.mrb[0].mxu0 %v311
        %v347 = vpop.f32.mrb[0].mxu0
        %v348 = vadd.f32 0.0, %v347
        %v349 = vpop.f32.mrb[0].mxu0
        %v350 = vpop.f32.mrb[0].mxu0
        %v351 = vpop.f32.mrb[0].mxu0
        %352 = vdwg.mxu0
        %v353 = vadd.f32 %v299, %v348
        %354 = vst [vmem:[#allocation2] sm:$0xff] %v353
        %355 = vset.pattern.permute.xlu0 2
        %356 = vperm.xlu0 %355, %v230
        %v357 = vpop.permute.xlu0 %356
        %v359 = vmul.f32 %v357, %v231
        %v360 = vld [vmem:[#allocation2] sm:$0xff]
        %v361 = vpack.c.bf16 %v359, %v359
        %s362 = scalar_lea.vmem %s222, 16
        %v363 = vld [vmem:[%s362] sm:$0xf]
        %v364 = vld [vmem:[%s362 + $0x4] sm:$0xf]
        %v367 = vunpack.c.l.b16 %v363
        %v368 = vunpack.c.l.b16 %v364
        %v369 = vpack.c.b16 %v368, %v367
        %v372 = vsel %vm248, %v361, 0
        %374 = vmatprep.subr.bf16.mxu0 0
        %375 = vmatpush1.bf16.msra.mxu0 %v369
        %376 = vmatprep.subr.bf16.mxu0 0
        %377 = vmatpush1.bf16.msra.mxu0 0
        %378 = vmatprep.subr.bf16.mxu0 0
        %379 = vmatpush1.bf16.msra.mxu0 0
        %380 = vmatprep.subr.bf16.mxu0 0
        %381 = vmatpush1.bf16.msra.mxu0 0
        %382 = vmatprep.subr.bf16.mxu0 0
        %383 = vmatpush1.bf16.msra.mxu0 0
        %384 = vmatprep.subr.bf16.mxu0 0
        %385 = vmatpush1.bf16.msra.mxu0 0
        %386 = vmatprep.subr.bf16.mxu0 0
        %387 = vmatpush1.bf16.msra.mxu0 0
        %388 = vmatprep.subr.bf16.mxu0 0
        %389 = vmatpush1.bf16.msra.mxu0 0
        %390 = vmatprep.subr.bf16.mxu0 0
        %391 = vmatpush1.bf16.msra.mxu0 0
        %392 = vmatprep.subr.bf16.mxu0 0
        %393 = vmatpush1.bf16.msra.mxu0 0
        %394 = vmatprep.subr.bf16.mxu0 0
        %395 = vmatpush1.bf16.msra.mxu0 0
        %396 = vmatprep.subr.bf16.mxu0 0
        %397 = vmatpush1.bf16.msra.mxu0 0
        %398 = vmatprep.subr.bf16.mxu0 0
        %399 = vmatpush1.bf16.msra.mxu0 0
        %400 = vmatprep.subr.bf16.mxu0 0
        %401 = vmatpush1.bf16.msra.mxu0 0
        %402 = vmatprep.subr.bf16.mxu0 0
        %403 = vmatpush1.bf16.msra.mxu0 0
        %404 = vmatprep.subr.bf16.mxu0 0
        %405 = vmatpush1.bf16.msra.mxu0 0
        %406 = vmatprep.mubr.bf16.mxu0 0
        %407 = vmatmul.mubr.bf16.gmra.mrb[0].mxu0 %v372
        %v408 = vpop.f32.mrb[0].mxu0
        %v409 = vadd.f32 0.0, %v408
        %v410 = vpop.f32.mrb[0].mxu0
        %v411 = vpop.f32.mrb[0].mxu0
        %v412 = vpop.f32.mrb[0].mxu0
        %413 = vdwg.mxu0
        %v414 = vadd.f32 %v360, %v409
        %415 = vst [vmem:[#allocation2] sm:$0xff] %v414
        %416 = vset.pattern.permute.xlu0 3
        %417 = vperm.xlu0 %416, %v230
        %v418 = vpop.permute.xlu0 %417
        %v420 = vmul.f32 %v418, %v231
        %v421 = vld [vmem:[#allocation2] sm:$0xff]
        %v422 = vpack.c.bf16 %v420, %v420
        %s423 = scalar_lea.vmem %s222, 24
        %v424 = vld [vmem:[%s423] sm:$0xf]
        %v425 = vld [vmem:[%s423 + $0x4] sm:$0xf]
        %v428 = vunpack.c.l.b16 %v424
        %v429 = vunpack.c.l.b16 %v425
        %v430 = vpack.c.b16 %v429, %v428
        %v433 = vsel %vm248, %v422, 0
        %435 = vmatprep.subr.bf16.mxu0 0
        %436 = vmatpush1.bf16.msra.mxu0 %v430
        %437 = vmatprep.subr.bf16.mxu0 0
        %438 = vmatpush1.bf16.msra.mxu0 0
        %439 = vmatprep.subr.bf16.mxu0 0
        %440 = vmatpush1.bf16.msra.mxu0 0
        %441 = vmatprep.subr.bf16.mxu0 0
        %442 = vmatpush1.bf16.msra.mxu0 0
        %443 = vmatprep.subr.bf16.mxu0 0
        %444 = vmatpush1.bf16.msra.mxu0 0
        %445 = vmatprep.subr.bf16.mxu0 0
        %446 = vmatpush1.bf16.msra.mxu0 0
        %447 = vmatprep.subr.bf16.mxu0 0
        %448 = vmatpush1.bf16.msra.mxu0 0
        %449 = vmatprep.subr.bf16.mxu0 0
        %450 = vmatpush1.bf16.msra.mxu0 0
        %451 = vmatprep.subr.bf16.mxu0 0
        %452 = vmatpush1.bf16.msra.mxu0 0
        %453 = vmatprep.subr.bf16.mxu0 0
        %454 = vmatpush1.bf16.msra.mxu0 0
        %455 = vmatprep.subr.bf16.mxu0 0
        %456 = vmatpush1.bf16.msra.mxu0 0
        %457 = vmatprep.subr.bf16.mxu0 0
        %458 = vmatpush1.bf16.msra.mxu0 0
        %459 = vmatprep.subr.bf16.mxu0 0
        %460 = vmatpush1.bf16.msra.mxu0 0
        %461 = vmatprep.subr.bf16.mxu0 0
        %462 = vmatpush1.bf16.msra.mxu0 0
        %463 = vmatprep.subr.bf16.mxu0 0
        %464 = vmatpush1.bf16.msra.mxu0 0
        %465 = vmatprep.subr.bf16.mxu0 0
        %466 = vmatpush1.bf16.msra.mxu0 0
        %467 = vmatprep.mubr.bf16.mxu0 0
        %468 = vmatmul.mubr.bf16.gmra.mrb[0].mxu0 %v433
        %v469 = vpop.f32.mrb[0].mxu0
        %v470 = vadd.f32 0.0, %v469
        %v471 = vpop.f32.mrb[0].mxu0
        %v472 = vpop.f32.mrb[0].mxu0
        %v473 = vpop.f32.mrb[0].mxu0
        %474 = vdwg.mxu0
        %v475 = vadd.f32 %v421, %v470
        %476 = vst [vmem:[#allocation2] sm:$0xff] %v475
        %477 = vset.pattern.permute.xlu0 4
        %478 = vperm.xlu0 %477, %v230
        %v479 = vpop.permute.xlu0 %478
        %v481 = vmul.f32 %v479, %v231
        %v482 = vld [vmem:[#allocation2] sm:$0xff]
        %v483 = vpack.c.bf16 %v481, %v481
        %s484 = scalar_lea.vmem %s222, 32
        %v485 = vld [vmem:[%s484] sm:$0xf]
        %v486 = vld [vmem:[%s484 + $0x4] sm:$0xf]
        %v489 = vunpack.c.l.b16 %v485
        %v490 = vunpack.c.l.b16 %v486
        %v491 = vpack.c.b16 %v490, %v489
        %v494 = vsel %vm248, %v483, 0
        %496 = vmatprep.subr.bf16.mxu0 0
        %497 = vmatpush1.bf16.msra.mxu0 %v491
        %498 = vmatprep.subr.bf16.mxu0 0
        %499 = vmatpush1.bf16.msra.mxu0 0
        %500 = vmatprep.subr.bf16.mxu0 0
        %501 = vmatpush1.bf16.msra.mxu0 0
        %502 = vmatprep.subr.bf16.mxu0 0
        %503 = vmatpush1.bf16.msra.mxu0 0
        %504 = vmatprep.subr.bf16.mxu0 0
        %505 = vmatpush1.bf16.msra.mxu0 0
        %506 = vmatprep.subr.bf16.mxu0 0
        %507 = vmatpush1.bf16.msra.mxu0 0
        %508 = vmatprep.subr.bf16.mxu0 0
        %509 = vmatpush1.bf16.msra.mxu0 0
        %510 = vmatprep.subr.bf16.mxu0 0
        %511 = vmatpush1.bf16.msra.mxu0 0
        %512 = vmatprep.subr.bf16.mxu0 0
        %513 = vmatpush1.bf16.msra.mxu0 0
        %514 = vmatprep.subr.bf16.mxu0 0
        %515 = vmatpush1.bf16.msra.mxu0 0
        %516 = vmatprep.subr.bf16.mxu0 0
        %517 = vmatpush1.bf16.msra.mxu0 0
        %518 = vmatprep.subr.bf16.mxu0 0
        %519 = vmatpush1.bf16.msra.mxu0 0
        %520 = vmatprep.subr.bf16.mxu0 0
        %521 = vmatpush1.bf16.msra.mxu0 0
        %522 = vmatprep.subr.bf16.mxu0 0
        %523 = vmatpush1.bf16.msra.mxu0 0
        %524 = vmatprep.subr.bf16.mxu0 0
        %525 = vmatpush1.bf16.msra.mxu0 0
        %526 = vmatprep.subr.bf16.mxu0 0
        %527 = vmatpush1.bf16.msra.mxu0 0
        %528 = vmatprep.mubr.bf16.mxu0 0
        %529 = vmatmul.mubr.bf16.gmra.mrb[0].mxu0 %v494
        %v530 = vpop.f32.mrb[0].mxu0
        %v531 = vadd.f32 0.0, %v530
        %v532 = vpop.f32.mrb[0].mxu0
        %v533 = vpop.f32.mrb[0].mxu0
        %v534 = vpop.f32.mrb[0].mxu0
        %535 = vdwg.mxu0
        %v536 = vadd.f32 %v482, %v531
        %537 = vst [vmem:[#allocation2] sm:$0xff] %v536
        %538 = vset.pattern.permute.xlu0 5
        %539 = vperm.xlu0 %538, %v230
        %v540 = vpop.permute.xlu0 %539
        %v542 = vmul.f32 %v540, %v231
        %v543 = vld [vmem:[#allocation2] sm:$0xff]
        %v544 = vpack.c.bf16 %v542, %v542
        %s545 = scalar_lea.vmem %s222, 40
        %v546 = vld [vmem:[%s545] sm:$0xf]
        %v547 = vld [vmem:[%s545 + $0x4] sm:$0xf]
        %v550 = vunpack.c.l.b16 %v546
        %v551 = vunpack.c.l.b16 %v547
        %v552 = vpack.c.b16 %v551, %v550
        %v555 = vsel %vm248, %v544, 0
        %557 = vmatprep.subr.bf16.mxu0 0
        %558 = vmatpush1.bf16.msra.mxu0 %v552
        %559 = vmatprep.subr.bf16.mxu0 0
        %560 = vmatpush1.bf16.msra.mxu0 0
        %561 = vmatprep.subr.bf16.mxu0 0
        %562 = vmatpush1.bf16.msra.mxu0 0
        %563 = vmatprep.subr.bf16.mxu0 0
        %564 = vmatpush1.bf16.msra.mxu0 0
        %565 = vmatprep.subr.bf16.mxu0 0
        %566 = vmatpush1.bf16.msra.mxu0 0
        %567 = vmatprep.subr.bf16.mxu0 0
        %568 = vmatpush1.bf16.msra.mxu0 0
        %569 = vmatprep.subr.bf16.mxu0 0
        %570 = vmatpush1.bf16.msra.mxu0 0
        %571 = vmatprep.subr.bf16.mxu0 0
        %572 = vmatpush1.bf16.msra.mxu0 0
        %573 = vmatprep.subr.bf16.mxu0 0
        %574 = vmatpush1.bf16.msra.mxu0 0
        %575 = vmatprep.subr.bf16.mxu0 0
        %576 = vmatpush1.bf16.msra.mxu0 0
        %577 = vmatprep.subr.bf16.mxu0 0
        %578 = vmatpush1.bf16.msra.mxu0 0
        %579 = vmatprep.subr.bf16.mxu0 0
        %580 = vmatpush1.bf16.msra.mxu0 0
        %581 = vmatprep.subr.bf16.mxu0 0
        %582 = vmatpush1.bf16.msra.mxu0 0
        %583 = vmatprep.subr.bf16.mxu0 0
        %584 = vmatpush1.bf16.msra.mxu0 0
        %585 = vmatprep.subr.bf16.mxu0 0
        %586 = vmatpush1.bf16.msra.mxu0 0
        %587 = vmatprep.subr.bf16.mxu0 0
        %588 = vmatpush1.bf16.msra.mxu0 0
        %589 = vmatprep.mubr.bf16.mxu0 0
        %590 = vmatmul.mubr.bf16.gmra.mrb[0].mxu0 %v555
        %v591 = vpop.f32.mrb[0].mxu0
        %v592 = vadd.f32 0.0, %v591
        %v593 = vpop.f32.mrb[0].mxu0
        %v594 = vpop.f32.mrb[0].mxu0
        %v595 = vpop.f32.mrb[0].mxu0
        %596 = vdwg.mxu0
        %v597 = vadd.f32 %v543, %v592
        %598 = vst [vmem:[#allocation2] sm:$0xff] %v597
        %599 = vset.pattern.permute.xlu0 6
        %600 = vperm.xlu0 %599, %v230
        %v601 = vpop.permute.xlu0 %600
        %v603 = vmul.f32 %v601, %v231
        %v604 = vld [vmem:[#allocation2] sm:$0xff]
        %v605 = vpack.c.bf16 %v603, %v603
        %s606 = scalar_lea.vmem %s222, 48
        %v607 = vld [vmem:[%s606] sm:$0xf]
        %v608 = vld [vmem:[%s606 + $0x4] sm:$0xf]
        %v611 = vunpack.c.l.b16 %v607
        %v612 = vunpack.c.l.b16 %v608
        %v613 = vpack.c.b16 %v612, %v611
        %v616 = vsel %vm248, %v605, 0
        %618 = vmatprep.subr.bf16.mxu0 0
        %619 = vmatpush1.bf16.msra.mxu0 %v613
        %620 = vmatprep.subr.bf16.mxu0 0
        %621 = vmatpush1.bf16.msra.mxu0 0
        %622 = vmatprep.subr.bf16.mxu0 0
        %623 = vmatpush1.bf16.msra.mxu0 0
        %624 = vmatprep.subr.bf16.mxu0 0
        %625 = vmatpush1.bf16.msra.mxu0 0
        %626 = vmatprep.subr.bf16.mxu0 0
        %627 = vmatpush1.bf16.msra.mxu0 0
        %628 = vmatprep.subr.bf16.mxu0 0
        %629 = vmatpush1.bf16.msra.mxu0 0
        %630 = vmatprep.subr.bf16.mxu0 0
        %631 = vmatpush1.bf16.msra.mxu0 0
        %632 = vmatprep.subr.bf16.mxu0 0
        %633 = vmatpush1.bf16.msra.mxu0 0
        %634 = vmatprep.subr.bf16.mxu0 0
        %635 = vmatpush1.bf16.msra.mxu0 0
        %636 = vmatprep.subr.bf16.mxu0 0
        %637 = vmatpush1.bf16.msra.mxu0 0
        %638 = vmatprep.subr.bf16.mxu0 0
        %639 = vmatpush1.bf16.msra.mxu0 0
        %640 = vmatprep.subr.bf16.mxu0 0
        %641 = vmatpush1.bf16.msra.mxu0 0
        %642 = vmatprep.subr.bf16.mxu0 0
        %643 = vmatpush1.bf16.msra.mxu0 0
        %644 = vmatprep.subr.bf16.mxu0 0
        %645 = vmatpush1.bf16.msra.mxu0 0
        %646 = vmatprep.subr.bf16.mxu0 0
        %647 = vmatpush1.bf16.msra.mxu0 0
        %648 = vmatprep.subr.bf16.mxu0 0
        %649 = vmatpush1.bf16.msra.mxu0 0
        %650 = vmatprep.mubr.bf16.mxu0 0
        %651 = vmatmul.mubr.bf16.gmra.mrb[0].mxu0 %v616
        %v652 = vpop.f32.mrb[0].mxu0
        %v653 = vadd.f32 0.0, %v652
        %v654 = vpop.f32.mrb[0].mxu0
        %v655 = vpop.f32.mrb[0].mxu0
        %v656 = vpop.f32.mrb[0].mxu0
        %657 = vdwg.mxu0
        %v658 = vadd.f32 %v604, %v653
        %659 = vst [vmem:[#allocation2] sm:$0xff] %v658
        %660 = vset.pattern.permute.xlu0 7
        %661 = vperm.xlu0 %660, %v230
        %v662 = vpop.permute.xlu0 %661
        %v664 = vmul.f32 %v662, %v231
        %v665 = vld [vmem:[#allocation2] sm:$0xff]
        %v666 = vpack.c.bf16 %v664, %v664
        %s667 = scalar_lea.vmem %s222, 56
        %v668 = vld [vmem:[%s667] sm:$0xf]
        %v669 = vld [vmem:[%s667 + $0x4] sm:$0xf]
        %v672 = vunpack.c.l.b16 %v668
        %v673 = vunpack.c.l.b16 %v669
        %v674 = vpack.c.b16 %v673, %v672
        %v677 = vsel %vm248, %v666, 0
        %679 = vmatprep.subr.bf16.mxu0 0
        %680 = vmatpush1.bf16.msra.mxu0 %v674
        %681 = vmatprep.subr.bf16.mxu0 0
        %682 = vmatpush1.bf16.msra.mxu0 0
        %683 = vmatprep.subr.bf16.mxu0 0
        %684 = vmatpush1.bf16.msra.mxu0 0
        %685 = vmatprep.subr.bf16.mxu0 0
        %686 = vmatpush1.bf16.msra.mxu0 0
        %687 = vmatprep.subr.bf16.mxu0 0
        %688 = vmatpush1.bf16.msra.mxu0 0
        %689 = vmatprep.subr.bf16.mxu0 0
        %690 = vmatpush1.bf16.msra.mxu0 0
        %691 = vmatprep.subr.bf16.mxu0 0
        %692 = vmatpush1.bf16.msra.mxu0 0
        %693 = vmatprep.subr.bf16.mxu0 0
        %694 = vmatpush1.bf16.msra.mxu0 0
        %695 = vmatprep.subr.bf16.mxu0 0
        %696 = vmatpush1.bf16.msra.mxu0 0
        %697 = vmatprep.subr.bf16.mxu0 0
        %698 = vmatpush1.bf16.msra.mxu0 0
        %699 = vmatprep.subr.bf16.mxu0 0
        %700 = vmatpush1.bf16.msra.mxu0 0
        %701 = vmatprep.subr.bf16.mxu0 0
        %702 = vmatpush1.bf16.msra.mxu0 0
        %703 = vmatprep.subr.bf16.mxu0 0
        %704 = vmatpush1.bf16.msra.mxu0 0
        %705 = vmatprep.subr.bf16.mxu0 0
        %706 = vmatpush1.bf16.msra.mxu0 0
        %707 = vmatprep.subr.bf16.mxu0 0
        %708 = vmatpush1.bf16.msra.mxu0 0
        %709 = vmatprep.subr.bf16.mxu0 0
        %710 = vmatpush1.bf16.msra.mxu0 0
        %711 = vmatprep.mubr.bf16.mxu0 0
        %712 = vmatmul.mubr.bf16.gmra.mrb[0].mxu0 %v677
        %v713 = vpop.f32.mrb[0].mxu0
        %v714 = vadd.f32 0.0, %v713
        %v715 = vpop.f32.mrb[0].mxu0
        %v716 = vpop.f32.mrb[0].mxu0
        %v717 = vpop.f32.mrb[0].mxu0
        %718 = vdwg.mxu0
        %v719 = vadd.f32 %v665, %v714
        %720 = vst [vmem:[#allocation2] sm:$0xff] %v719
        // Predicated region
        $region37: #{frequency_bias_forward.1} parent=31 // pred_check
          %p721 = pneg %p125
        $region38: #{frequency_bias_forward.1} parent=31 // pred_check_branch
          %723 = sbr.rel (%p721) target = $region40
        $region39: #{frequency_bias_forward.1} parent=31 // pred_region
          %s725 = ssub.s32 128, 128
          %726 = vsyncadd [#allocation3], %s725
          %s727 = smul.addr %s19, 128
          %s728 = scalar_lea.hbm %s3, %s727
          %s730 = sshll.u32 [#allocation2], 4
          %s731 = int_to_ptr.vmem [resolvable:$true] %s730
          %733 = dma.vmem_to_hbm [thread:$0]  %s731, 128, %s728, [#allocation3]
        $region40: #{frequency_bias_forward.1} parent=31 // pred_fallthru
          _
        // Predicated region
        $region41: #{frequency_bias_forward.1} parent=31 // pred_check
          %p734 = pneg %p125
        $region42: #{frequency_bias_forward.1} parent=31 // pred_check_branch
          %736 = sbr.rel (%p734) target = $region44
        $region43: #{frequency_bias_forward.1} parent=31 // pred_region
          %737 = dma.done [#allocation3], 128
        $region44: #{frequency_bias_forward.1} parent=31 // pred_fallthru
          _
      $region32: #{frequency_bias_forward.1} parent=5 // pred_fallthru
        _
      %p738 = scmp.le.s32.totalorder 2, %s10
      // Predicated region
      $region45: #{frequency_bias_forward.1} parent=5 // pred_check
        %p739 = pneg %p738
      $region46: #{frequency_bias_forward.1} parent=5 // pred_check_branch
        %741 = sbr.rel (%p739) target = $region48
      $region47: #{frequency_bias_forward.1} parent=5 // pred_region
        %s742 = ssub.s32 %s10, 2
      $region48: #{frequency_bias_forward.1} parent=5 // pred_fallthru
        _
    $region6: #{frequency_bias_forward.1} parent=1 // loop_footer
      %s14 = sadd.s32 1, %s10
    $region7: #{frequency_bias_forward.1} parent=1 // loop_footer_branch
      %9 = sbr.rel target = $region3
    $region8: #{frequency_bias_forward.1} parent=1 // loop_exit
      _
    %743 = vsyncpa [#allocation3], 1
    %s744 = scalar_lea.sflag [#allocation3], 1
    %745 = vsyncpa %s744, 1

</llo_original>
